<compile_context>
chip_gen: v7x
topology: tpu7x:2x2x1
jax: 0.10.0
libtpu: 0.0.40
codegen_flags: <defaults>
</compile_context>

<pallas_src>
import jax
import jax.numpy as jnp
from jax.experimental import pallas as pl
from jax.experimental.pallas import tpu as pltpu

_LANE = 128
_SUBLANE = 8
_DEFAULT_VMEM_BUDGET = 24 * 1024 * 1024      # per-call scoped-VMEM budget for tile sizing
_VMEM_LIMIT_BYTES = 32 * 1024 * 1024         # explicit scoped limit (<= v7x 64 MiB physical)
_MAX_BATCH_TILE = 4096
_XLA_FALLBACK_MACS = 1 << 16                 # below this many MACs, bypass Pallas


def _round_up(x, m):
    return ((x + m - 1) // m) * m


def _linear_kernel(x_ref, wt_ref, b_ref, y_ref):
    # x_ref:  (TB, in_dim)    VMEM, tiled over the batch grid axis (double-buffered)
    # wt_ref: (in_dim, out_w) VMEM, grid-invariant (single-buffered)
    # b_ref:  (1, out_w)      VMEM, grid-invariant (single-buffered), f32
    # y_ref:  (TB, out_w)     VMEM output tile
    y = jnp.dot(x_ref[...], wt_ref[...], preferred_element_type=jnp.float32)
    y = y + b_ref[...]                      # bias add in f32, broadcast over rows
    y_ref[...] = y.astype(y_ref.dtype)      # single cast at the end


def init_feedforward_head_params(weight, bias, *, param_dtype=None):
    """One-time param prep (do this at module init, not per forward call).

    weight: [out_dim, in_dim] (PyTorch nn.Linear layout), bias: [out_dim].
    Returns (wt, b2, out_dim):
      wt: [in_dim, out_w] pre-transposed weight (optionally cast to param_dtype, e.g. bf16),
      b2: [1, out_w] f32 bias (the in-kernel bias add stays f32).
    out_w == out_dim for small heads (avoids 16x output write amplification); it is only
    lane-padded to a multiple of 128 when the waste is <= 12.5% (near-lane-dense already).
    """
    out_dim, in_dim = weight.shape
    if param_dtype is not None:
        weight = weight.astype(param_dtype)           # e.g. bf16: halves HBM traffic / VMEM
    out_pad = _round_up(out_dim, _LANE)
    if out_pad == out_dim or (out_pad - out_dim) * 8 <= out_dim:
        out_w = out_pad                               # lane-dense stores, negligible waste
    else:
        out_w = out_dim                               # tiny head: true width, masked stores
    wt = jnp.zeros((in_dim, out_w), weight.dtype).at[:, :out_dim].set(weight.T)
    b2 = jnp.zeros((1, out_w), jnp.float32).at[0, :out_dim].set(bias.astype(jnp.float32))
    return wt, b2, out_dim


def _derive_batch_tile(B, in_dim, out_w, x_item, w_item, y_item, budget):
    """Largest batch tile that fits the VMEM budget; keeps >=2 (>=4) grid steps for big B."""
    resident = in_dim * out_w * w_item + out_w * 4          # single-buffered weight + f32 bias
    per_row = 2 * (in_dim * x_item + out_w * y_item)        # double-buffered x and y tiles
    tb = (budget - resident) // max(per_row, 1)
    tb = max(_SUBLANE, min(int(tb), _MAX_BATCH_TILE))
    tb = (tb // _SUBLANE) * _SUBLANE
    # v7x: make sure the "parallel" batch axis has work for both TensorCores.
    if B >= 4 * 1024:
        tb = min(tb, _round_up(pl.cdiv(B, 4), _SUBLANE))
    elif B >= 1024:
        tb = min(tb, _round_up(pl.cdiv(B, 2), _SUBLANE))
    return max(tb, _SUBLANE)


def feedforward_head(x, wt, b2, out_dim, inputs=None, *, batch_tile=None,
                     vmem_budget_bytes=_DEFAULT_VMEM_BUDGET, force_pallas=False):
    """FeedforwardHead.forward: returns (x @ W^T + b, x).

    `inputs` is accepted for signature parity with the PyTorch module and ignored (as there).
    The identity second output needs no kernel work and is returned as-is (zero HBM traffic).
    """
    del inputs
    B, in_dim = x.shape
    out_w = wt.shape[1]

    # Tiny-shape fast path: the fixed Pallas custom-call / grid prolog+epilog overhead dwarfs a
    # few-thousand-MAC matmul; let XLA run/fuse it directly instead.
    # TODO(synk): fuse this head into the upstream RNN Pallas kernel for per-step inference.
    if not force_pallas and B * in_dim * out_w < _XLA_FALLBACK_MACS:
        y = jnp.dot(x, wt, preferred_element_type=jnp.float32) + b2[0]
        y = y.astype(x.dtype)
        return (y if out_w == out_dim else y[:, :out_dim]), x

    x_item = jnp.dtype(x.dtype).itemsize
    w_item = jnp.dtype(wt.dtype).itemsize
    y_item = x_item
    if batch_tile is None:
        batch_tile = _derive_batch_tile(B, in_dim, out_w, x_item, w_item, y_item,
                                        vmem_budget_bytes)
    TB = B if B <= batch_tile else batch_tile
    grid = (pl.cdiv(B, TB),)

    cost = pl.CostEstimate(
        flops=2 * B * in_dim * out_w,
        transcendentals=0,
        bytes_accessed=(x.size * x_item
                        + wt.size * w_item
                        + b2.size * jnp.dtype(b2.dtype).itemsize
                        + B * out_w * y_item),
    )

    y = pl.pallas_call(
        _linear_kernel,
        out_shape=jax.ShapeDtypeStruct((B, out_w), x.dtype),
        grid=grid,
        in_specs=[
            # x: tiled over the batch axis, double-buffered by the pipeline.
            pl.BlockSpec((TB, in_dim), lambda i: (i, 0)),
            # weight/bias: grid-invariant blocks -> single-buffered to halve their VMEM footprint.
            pl.BlockSpec((in_dim, out_w), lambda i: (0, 0), pipeline_mode=pl.Buffered(1)),
            pl.BlockSpec((1, out_w), lambda i: (0, 0), pipeline_mode=pl.Buffered(1)),
        ],
        out_specs=pl.BlockSpec((TB, out_w), lambda i: (i, 0)),
        compiler_params=pltpu.CompilerParams(
            dimension_semantics=("parallel",),      # shard batch tiles across TCs on v7x
            vmem_limit_bytes=_VMEM_LIMIT_BYTES,     # explicit scoped limit, valid on all gens
        ),
        cost_estimate=cost,
    )(x, wt, b2)

    # Slice only if the padded-output path was chosen; pass x through untouched.
    return (y if out_w == out_dim else y[:, :out_dim]), x


if __name__ == "__main__":
    # Small shapes implied by the module: in_dim = rnn_hidden_dim, out_dim = n_actions.
    batch, in_dim, out_dim = 8, 32, 8

    key = jax.random.PRNGKey(0)
    kx, kw, kb, kx2 = jax.random.split(key, 4)
    x = jax.random.normal(kx, (batch, in_dim), dtype=jnp.float32)
    # nn.Linear-style parameters: weight [out, in], bias [out]
    weight = jax.random.normal(kw, (out_dim, in_dim), dtype=jnp.float32) * 0.1
    bias = jax.random.normal(kb, (out_dim,), dtype=jnp.float32) * 0.1
    inputs = jnp.zeros((batch, 4), dtype=jnp.float32)   # unused by the module's forward

    # One-time prep (transpose + optional pad / dtype cast), then the per-step forward.
    wt, b2, od = init_feedforward_head_params(weight, bias)
    y_ref = x @ weight.T + bias

    # 1) Pallas kernel path (forced so the kernel itself is exercised at demo shapes).
    y, x_out = feedforward_head(x, wt, b2, od, inputs, force_pallas=True)
    jax.block_until_ready((y, x_out))
    assert y.shape == (batch, out_dim) and x_out.shape == (batch, in_dim)
    assert jnp.allclose(y, y_ref, atol=1e-4, rtol=1e-5), "mismatch vs reference linear (pallas)"
    assert jnp.array_equal(x_out, x), "pass-through output mismatch"

    # 2) Default dispatch at these tiny shapes takes the XLA fast path; must match too.
    y_fast, _ = feedforward_head(x, wt, b2, od, inputs)
    jax.block_until_ready(y_fast)
    assert jnp.allclose(y_fast, y_ref, atol=1e-4, rtol=1e-5), "mismatch vs reference (fast path)"

    # 3) Larger batch exercising the batch-tiled grid (3 steps) incl. a partial last tile.
    B2 = 300
    x2 = jax.random.normal(kx2, (B2, in_dim), dtype=jnp.float32)
    y2, x2_out = feedforward_head(x2, wt, b2, od, batch_tile=128, force_pallas=True)
    jax.block_until_ready((y2, x2_out))
    y2_ref = x2 @ weight.T + bias
    assert y2.shape == (B2, out_dim)
    assert jnp.allclose(y2, y2_ref, atol=1e-4, rtol=1e-5), "mismatch vs reference (tiled)"
    assert jnp.array_equal(x2_out, x2), "pass-through output mismatch (tiled)"

    print("KERNEL_OK")
</pallas_src>

<mosaic_0001>
module attributes {stable_mosaic.version = 11 : i64} {
  func.func @_linear_kernel(%arg0: i32, %arg1: memref<8x32xf32, #tpu.memory_space<vmem>>, %arg2: memref<32x8xf32, #tpu.memory_space<vmem>>, %arg3: memref<1x8xf32, #tpu.memory_space<vmem>>, %arg4: memref<8x8xf32, #tpu.memory_space<vmem>>) attributes {dimension_semantics = [#tpu.dimension_semantics<parallel>], iteration_bounds = array<i64: 1>, scalar_prefetch = 0 : i64, scratch_operands = 0 : i64, tpu.core_type = #tpu.core_type<tc>, window_params = [{transform_indices = @transform_0, window_bounds = array<i64: 8, 32>}, {pipeline_mode = #tpu.pipeline_mode<synchronous>, transform_indices = @transform_1, window_bounds = array<i64: 32, 8>}, {pipeline_mode = #tpu.pipeline_mode<synchronous>, transform_indices = @transform_2, window_bounds = array<i64: 1, 8>}, {transform_indices = @transform_3, window_bounds = array<i64: 8, 8>}]} {
    %c0 = arith.constant 0 : index
    %c0_0 = arith.constant 0 : index
    %0 = vector.load %arg1[%c0, %c0_0] : memref<8x32xf32, #tpu.memory_space<vmem>>, vector<8x32xf32>
    %c0_1 = arith.constant 0 : index
    %c0_2 = arith.constant 0 : index
    %1 = vector.load %arg2[%c0_1, %c0_2] : memref<32x8xf32, #tpu.memory_space<vmem>>, vector<32x8xf32>
    %cst = arith.constant dense<0.000000e+00> : vector<8x8xf32>
    %2 = tpu.matmul %0, %1, %cst {dimension_numbers = #tpu.dot_dimension_numbers<[1], [0], [0], [1], [0, 0, 1, 1], [], []>} : vector<8x32xf32>, vector<32x8xf32>, vector<8x8xf32> -> vector<8x8xf32>
    %c0_3 = arith.constant 0 : index
    %c0_4 = arith.constant 0 : index
    %3 = vector.load %arg3[%c0_3, %c0_4] : memref<1x8xf32, #tpu.memory_space<vmem>>, vector<1x8xf32>
    %4 = vector.broadcast %3 : vector<1x8xf32> to vector<8x8xf32>
    %5 = arith.addf %2, %4 : vector<8x8xf32>
    %c0_5 = arith.constant 0 : index
    %c0_6 = arith.constant 0 : index
    %6 = vector.load %arg4[%c0_5, %c0_6] : memref<8x8xf32, #tpu.memory_space<vmem>>, vector<8x8xf32>
    tpu.vector_store %arg4[%c0_5, %c0_6], %5 {strides = array<i32>} : memref<8x8xf32, #tpu.memory_space<vmem>>, vector<8x8xf32>,
    return
  }
  func.func @transform_0(%arg0: i32) -> (i32, i32) {
    %c0_i32 = arith.constant 0 : i32
    %c0_i32_0 = arith.constant 0 : i32
    return %arg0, %c0_i32 : i32, i32
  }
  func.func @transform_1(%arg0: i32) -> (i32, i32) {
    %c0_i32 = arith.constant 0 : i32
    %c0_i32_0 = arith.constant 0 : i32
    %c0_i32_1 = arith.constant 0 : i32
    return %c0_i32, %c0_i32_0 : i32, i32
  }
  func.func @transform_2(%arg0: i32) -> (i32, i32) {
    %c0_i32 = arith.constant 0 : i32
    %c0_i32_0 = arith.constant 0 : i32
    %c0_i32_1 = arith.constant 0 : i32
    return %c0_i32, %c0_i32_0 : i32, i32
  }
  func.func @transform_3(%arg0: i32) -> (i32, i32) {
    %c0_i32 = arith.constant 0 : i32
    %c0_i32_0 = arith.constant 0 : i32
    return %arg0, %c0_i32 : i32, i32
  }
}

</mosaic_0001>

<llo_original>
// kernel: tpu_custom_call.1
$region0: #{tpu_custom_call.1}
  #allocation0 [shape = 'u32[]', space=smem, size = 0x4, offset = 0x4, fixed_abs, tag = 'smem constant byte address 0x4 - core index']
  #allocation1 [shape = 'u32[144,128]{1,0:T(1,128)}', space=vmem, size = 0x12000, scoped, tag = 'internal scratch']
  %s0 = inlined_call_operand.vmem [shape: f32[8,32], index: 0, kind: input, shape index: {}]
  %s1 = inlined_call_operand.vmem [shape: f32[32,8], index: 1, kind: input, shape index: {}]
  %s2 = inlined_call_operand.vmem [shape: f32[1,8], index: 2, kind: input, shape index: {}]
  %s3 = inlined_call_operand.hbm [shape: f32[8,8], index: 3, kind: output, shape index: {}]
  %s4 = sld [smem:[#allocation0]]
  $region22: #{tpu_custom_call.1} parent=0
    _
  %s6 = ssub.s32 1, %s4
  %s7 = scalar_select 0, %s6, %s4
  $region1: #{tpu_custom_call.1} parent=0
    #allocation2 [shape = 'u8[4096]{0}', space=vmem, size = 0x1000, scoped, tag = 'output window, operand 0, single buffered']
    #allocation3 [shape = 's32[1]{0}', space=sflag, size = 0x4, scoped, tag = 'scoped memory for tpu_custom_call.1']
    %8 = vsyncpa [#allocation3], 0
    // Predicated region
    $region2: #{tpu_custom_call.1} parent=1 // pred_check
      _
    $region3: #{tpu_custom_call.1} parent=1 // pred_check_branch
      %10 = sbr.rel (0) target = $region5
    $region4: #{tpu_custom_call.1} parent=1 // pred_region
      _
    $region5: #{tpu_custom_call.1} parent=1 // pred_fallthru
      _
    // Predicated region
    $region6: #{tpu_custom_call.1} parent=1 // pred_check
      _
    $region7: #{tpu_custom_call.1} parent=1 // pred_check_branch
      %12 = sbr.rel (0) target = $region9
    $region8: #{tpu_custom_call.1} parent=1 // pred_region
      _
    $region9: #{tpu_custom_call.1} parent=1 // pred_fallthru
      _
    // Predicated region
    $region10: #{tpu_custom_call.1} parent=1 // pred_check
      _
    $region11: #{tpu_custom_call.1} parent=1 // pred_check_branch
      %14 = sbr.rel (0) target = $region13
    $region12: #{tpu_custom_call.1} parent=1 // pred_region
      _
    $region13: #{tpu_custom_call.1} parent=1 // pred_fallthru
      _
    %v15 = vld [vmem:[%s0] sm:$0xff]
    %v16 = vld [vmem:[%s1] sm:$0xff]
    %v17 = vld [vmem:[%s1 + $0x8] sm:$0xff]
    %v18 = vld [vmem:[%s1 + $0x10] sm:$0xff]
    %v19 = vld [vmem:[%s1 + $0x18] sm:$0xff]
    %v20 = vld [vmem:[%s2] sm:$0x1]
    %v22 = vlaneseq
    %v23 = vshrl.u32 %v22, 7
    %v24 = vsub.s32 0, %v23
    %v25 = vrot.slane %v20, %v24
    %vm27 = vcmask 261120
    %v29 = vsel %vm27, %v15, 0
    %31 = vmatprep.subr.mxu0 0.0
    %32 = vmatpush1.msra.mxu0 %v16
    %33 = vmatprep.subr.mxu0 0.0
    %34 = vmatpush1.msra.mxu0 %v17
    %35 = vmatprep.subr.mxu0 0.0
    %36 = vmatpush1.msra.mxu0 %v18
    %37 = vmatprep.subr.mxu0 0.0
    %38 = vmatpush1.msra.mxu0 %v19
    %39 = vmatprep.subr.mxu0 0.0
    %40 = vmatpush1.msra.mxu0 0.0
    %41 = vmatprep.subr.mxu0 0.0
    %42 = vmatpush1.msra.mxu0 0.0
    %43 = vmatprep.subr.mxu0 0.0
    %44 = vmatpush1.msra.mxu0 0.0
    %45 = vmatprep.subr.mxu0 0.0
    %46 = vmatpush1.msra.mxu0 0.0
    %47 = vmatprep.subr.mxu0 0.0
    %48 = vmatpush1.msra.mxu0 0.0
    %49 = vmatprep.subr.mxu0 0.0
    %50 = vmatpush1.msra.mxu0 0.0
    %51 = vmatprep.subr.mxu0 0.0
    %52 = vmatpush1.msra.mxu0 0.0
    %53 = vmatprep.subr.mxu0 0.0
    %54 = vmatpush1.msra.mxu0 0.0
    %55 = vmatprep.subr.mxu0 0.0
    %56 = vmatpush1.msra.mxu0 0.0
    %57 = vmatprep.subr.mxu0 0.0
    %58 = vmatpush1.msra.mxu0 0.0
    %59 = vmatprep.subr.mxu0 0.0
    %60 = vmatpush1.msra.mxu0 0.0
    %61 = vmatprep.subr.mxu0 0.0
    %62 = vmatpush1.msra.mxu0 0.0
    %63 = vmatprep.subr.mxu0 0.0
    %64 = vmatpush1.msra.mxu0 0.0
    %65 = vmatprep.subr.mxu0 0.0
    %66 = vmatpush1.msra.mxu0 0.0
    %67 = vmatprep.subr.mxu0 0.0
    %68 = vmatpush1.msra.mxu0 0.0
    %69 = vmatprep.subr.mxu0 0.0
    %70 = vmatpush1.msra.mxu0 0.0
    %71 = vmatprep.subr.mxu0 0.0
    %72 = vmatpush1.msra.mxu0 0.0
    %73 = vmatprep.subr.mxu0 0.0
    %74 = vmatpush1.msra.mxu0 0.0
    %75 = vmatprep.subr.mxu0 0.0
    %76 = vmatpush1.msra.mxu0 0.0
    %77 = vmatprep.subr.mxu0 0.0
    %78 = vmatpush1.msra.mxu0 0.0
    %79 = vmatprep.subr.mxu0 0.0
    %80 = vmatpush1.msra.mxu0 0.0
    %81 = vmatprep.subr.mxu0 0.0
    %82 = vmatpush1.msra.mxu0 0.0
    %83 = vmatprep.subr.mxu0 0.0
    %84 = vmatpush1.msra.mxu0 0.0
    %85 = vmatprep.subr.mxu0 0.0
    %86 = vmatpush1.msra.mxu0 0.0
    %87 = vmatprep.subr.mxu0 0.0
    %88 = vmatpush1.msra.mxu0 0.0
    %89 = vmatprep.subr.mxu0 0.0
    %90 = vmatpush1.msra.mxu0 0.0
    %91 = vmatprep.subr.mxu0 0.0
    %92 = vmatpush1.msra.mxu0 0.0
    %93 = vmatprep.subr.mxu0 0.0
    %94 = vmatpush1.msra.mxu0 0.0
    %95 = vmatprep.mubr.f32.mxu0 0.0
    %96 = vmatmul.mubr.f32.gmra.mrb[0].mxu0 %v29
    %v97 = vpop.f32.mrb[0].mxu0
    %v98 = vadd.f32 %v25, %v97
    %v99 = vpop.f32.mrb[0].mxu0
    %100 = vdwg.mxu0
    %vm101 = vcmask 64512
    %102 = vst.msk [vmem:[#allocation2] sm:$0xff] %vm101, %v98
    // Predicated region
    $region14: #{tpu_custom_call.1} parent=1 // pred_check
      _
    $region15: #{tpu_custom_call.1} parent=1 // pred_check_branch
      %104 = sbr.rel (0) target = $region17
    $region16: #{tpu_custom_call.1} parent=1 // pred_region
      %s106 = ssub.s32 128, 128
      %107 = vsyncadd [#allocation3], %s106
      %s109 = sshll.u32 [#allocation2], 4
      %s110 = int_to_ptr.vmem [resolvable:$true] %s109
      %112 = dma.vmem_to_hbm [thread:$0]  %s110, 128, %s3, [#allocation3]
    $region17: #{tpu_custom_call.1} parent=1 // pred_fallthru
      _
    // Predicated region
    $region18: #{tpu_custom_call.1} parent=1 // pred_check
      _
    $region19: #{tpu_custom_call.1} parent=1 // pred_check_branch
      %114 = sbr.rel (0) target = $region21
    $region20: #{tpu_custom_call.1} parent=1 // pred_region
      %115 = dma.done [#allocation3], 128
    $region21: #{tpu_custom_call.1} parent=1 // pred_fallthru
      _
    %116 = vsyncpa [#allocation3], 1

</llo_original>
